<compile_context>
chip_gen: v5e
topology: v5e:2x2
jax: 0.10.0
libtpu: 0.0.40
codegen_flags: <defaults>
</compile_context>

<pallas_src>
import math

import jax
import jax.numpy as jnp
from jax.experimental import pallas as pl
from jax.experimental.pallas import tpu as pltpu


def _drop_path_kernel(scale_ref, x_ref, o_ref):
    # scale_ref: (bn, 1) per-sample scale (0 or 1/keep_prob), same dtype as x.
    # x_ref / o_ref: (bn, bd) tile; bd is lane-dense (multiple of 128) or the
    # full last dim, so output stores are full-lane vst where possible.
    o_ref[...] = x_ref[...] * scale_ref[...]


def _pick_block(n, d):
    """Tile sizes respecting the (8, 128)/full-dim BlockSpec rule.

    Target roughly 0.5M elements per x tile (2 MiB @ f32) so that, double
    buffered (x in + out), the resident set stays well under the scoped-VMEM
    default on v5e/v6e/v7x, while tiles are large enough to hit the HBM
    roofline (per-step overhead amortized).
    """
    if d % 128 == 0:
        bd = min(d, 4096)                  # lane-dense, multiple of 128
    else:
        bd = d                             # full last dim (always legal)

    target_rows = max(8, (512 * 1024) // max(bd, 1))
    if n <= target_rows:
        bn = n                             # full first dim (always legal)
    else:
        bn = min(1024, max(8, (target_rows // 8) * 8))  # multiple of 8
    return bn, bd


@jax.jit
def _drop_path_apply(x, scale):
    """out = x * scale[sample]; scale shape (N,), broadcast over trailing dims."""
    n = x.shape[0]
    d = int(math.prod(x.shape[1:])) if x.ndim > 1 else 1
    x2 = x.reshape(n, d)                   # free reshape of contiguous layout
    s2 = scale.reshape(n, 1).astype(x.dtype)

    bn, bd = _pick_block(n, d)
    grid = (pl.cdiv(n, bn), pl.cdiv(d, bd))  # columns innermost: scale block
                                             # index is constant across it.

    out2 = pl.pallas_call(
        _drop_path_kernel,
        grid=grid,
        in_specs=[
            pl.BlockSpec((bn, 1), lambda i, j: (i, 0)),    # per-sample scale
            pl.BlockSpec((bn, bd), lambda i, j: (i, j)),   # x tile
        ],
        out_specs=pl.BlockSpec((bn, bd), lambda i, j: (i, j)),
        out_shape=jax.ShapeDtypeStruct((n, d), x.dtype),
        compiler_params=pltpu.CompilerParams(
            dimension_semantics=("parallel", "parallel")),
    )(s2, x2)
    return out2.reshape(x.shape)


def drop_path(x, *, key=None, drop_prob: float = 0.0, training: bool = False,
              scale_by_keep: bool = True):
    """JAX/Pallas equivalent of timm's drop_path forward."""
    if drop_prob == 0.0 or not training:
        return x                           # identity path, no kernel launch
    if key is None:
        raise ValueError("PRNG key required when training with drop_prob > 0")
    keep_prob = 1.0 - drop_prob
    n = x.shape[0]
    # TODO(synk): torch's in-place .bernoulli_() RNG stream cannot be
    # bit-matched; the per-sample mask is drawn with jax.random instead.
    keep = jax.random.bernoulli(key, keep_prob, (n,)).astype(x.dtype)
    if keep_prob > 0.0 and scale_by_keep:
        scale = keep / keep_prob
    else:
        scale = keep
    return _drop_path_apply(x, scale)


if __name__ == "__main__":
    key = jax.random.PRNGKey(0)
    k_x, k_mask, k_x2 = jax.random.split(key, 3)

    # Shapes consistent with the module's typical use (per-sample residual drop).
    N, C, H, W = 2, 4, 16, 16
    drop_prob = 0.25
    keep_prob = 1.0 - drop_prob

    x = jax.random.normal(k_x, (N, C, H, W), dtype=jnp.float32)

    # --- training path: kernel applies the per-sample scaled mask ------------
    out = drop_path(x, key=k_mask, drop_prob=drop_prob, training=True)
    out = jax.block_until_ready(out)

    keep_ref = jax.random.bernoulli(k_mask, keep_prob, (N,)).astype(x.dtype)
    ref = x * (keep_ref / keep_prob).reshape(N, 1, 1, 1)
    assert out.shape == x.shape, out.shape
    assert jnp.allclose(out, ref, atol=1e-6, rtol=1e-6), float(
        jnp.max(jnp.abs(out - ref)))

    # --- identity paths (eval mode / drop_prob == 0) --------------------------
    out_eval = drop_path(x, drop_prob=drop_prob, training=False)
    assert jnp.array_equal(out_eval, x)
    out_zero = drop_path(x, key=k_mask, drop_prob=0.0, training=True)
    assert jnp.array_equal(out_zero, x)

    # --- non-128-multiple trailing size exercises the full-dim block path -----
    x2 = jax.random.normal(k_x2, (16, 3, 7, 5), dtype=jnp.float32)
    out2 = jax.block_until_ready(
        drop_path(x2, key=k_mask, drop_prob=drop_prob, training=True))
    keep2 = jax.random.bernoulli(k_mask, keep_prob, (16,)).astype(x2.dtype)
    ref2 = x2 * (keep2 / keep_prob).reshape(16, 1, 1, 1)
    assert jnp.allclose(out2, ref2, atol=1e-6, rtol=1e-6)

    # --- scale_by_keep=False path ---------------------------------------------
    out3 = jax.block_until_ready(
        drop_path(x, key=k_mask, drop_prob=drop_prob, training=True,
                  scale_by_keep=False))
    ref3 = x * keep_ref.reshape(N, 1, 1, 1)
    assert jnp.allclose(out3, ref3, atol=1e-6, rtol=1e-6)

    # --- bf16 dtype preserved --------------------------------------------------
    xb = x.astype(jnp.bfloat16)
    outb = jax.block_until_ready(
        drop_path(xb, key=k_mask, drop_prob=drop_prob, training=True))
    assert outb.dtype == jnp.bfloat16

    print("KERNEL_OK")
</pallas_src>

<mosaic_0001>
module attributes {stable_mosaic.version = 11 : i64} {
  func.func @_drop_path_kernel(%arg0: i32, %arg1: i32, %arg2: memref<2x1xf32, #tpu.memory_space<vmem>>, %arg3: memref<2x1024xf32, #tpu.memory_space<vmem>>, %arg4: memref<2x1024xf32, #tpu.memory_space<vmem>>) attributes {dimension_semantics = [#tpu.dimension_semantics<parallel>, #tpu.dimension_semantics<parallel>], iteration_bounds = array<i64: 1, 1>, scalar_prefetch = 0 : i64, scratch_operands = 0 : i64, tpu.core_type = #tpu.core_type<tc>, window_params = [{transform_indices = @transform_0, window_bounds = array<i64: 2, 1>}, {transform_indices = @transform_1, window_bounds = array<i64: 2, 1024>}, {transform_indices = @transform_2, window_bounds = array<i64: 2, 1024>}]} {
    %c0 = arith.constant 0 : index
    %c0_0 = arith.constant 0 : index
    %0 = vector.load %arg3[%c0, %c0_0] : memref<2x1024xf32, #tpu.memory_space<vmem>>, vector<2x1024xf32>
    %c0_1 = arith.constant 0 : index
    %c0_2 = arith.constant 0 : index
    %1 = vector.load %arg2[%c0_1, %c0_2] : memref<2x1xf32, #tpu.memory_space<vmem>>, vector<2x1xf32>
    %2 = vector.broadcast %1 : vector<2x1xf32> to vector<2x1024xf32>
    %3 = arith.mulf %0, %2 : vector<2x1024xf32>
    %c0_3 = arith.constant 0 : index
    %c0_4 = arith.constant 0 : index
    %4 = vector.load %arg4[%c0_3, %c0_4] : memref<2x1024xf32, #tpu.memory_space<vmem>>, vector<2x1024xf32>
    tpu.vector_store %arg4[%c0_3, %c0_4], %3 {strides = array<i32>} : memref<2x1024xf32, #tpu.memory_space<vmem>>, vector<2x1024xf32>,
    return
  }
  func.func @transform_0(%arg0: i32, %arg1: i32) -> (i32, i32) {
    %c0_i32 = arith.constant 0 : i32
    %c0_i32_0 = arith.constant 0 : i32
    return %arg0, %c0_i32 : i32, i32
  }
  func.func @transform_1(%arg0: i32, %arg1: i32) -> (i32, i32) {
    %c0_i32 = arith.constant 0 : i32
    return %arg0, %arg1 : i32, i32
  }
  func.func @transform_2(%arg0: i32, %arg1: i32) -> (i32, i32) {
    %c0_i32 = arith.constant 0 : i32
    return %arg0, %arg1 : i32, i32
  }
}

</mosaic_0001>

<llo_original>
// kernel: _drop_path_apply.1
$region0: #{_drop_path_apply.1}
  #allocation0 [shape = 'u32[]', space=smem, size = 0x4, offset = 0x4, fixed_abs, tag = 'smem constant byte address 0x4 - core index']
  #allocation1 [shape = 'u32[72,128]{1,0:T(1,128)}', space=vmem, size = 0x9000, scoped, tag = 'internal scratch']
  %s0 = inlined_call_operand.vmem [shape: f32[2,1], index: 0, kind: input, shape index: {}]
  %s1 = inlined_call_operand.vmem [shape: f32[2,1024], index: 1, kind: input, shape index: {}]
  %s2 = inlined_call_operand.vmem [shape: f32[2,1024], index: 2, kind: output, shape index: {}]
  %s3 = sld [smem:[#allocation0]]
  $region18: #{_drop_path_apply.1} parent=0
    _
  %s5 = ssub.s32 1, %s3
  %s6 = scalar_select 0, %s5, %s3
  // Predicated region
  $region2: #{_drop_path_apply.1} parent=0 // pred_check
    _
  $region3: #{_drop_path_apply.1} parent=0 // pred_check_branch
    %8 = sbr.rel (0) target = $region5
  $region4: #{_drop_path_apply.1} parent=0 // pred_region
    _
  $region5: #{_drop_path_apply.1} parent=0 // pred_fallthru
    _
  // Predicated region
  $region6: #{_drop_path_apply.1} parent=0 // pred_check
    _
  $region7: #{_drop_path_apply.1} parent=0 // pred_check_branch
    %10 = sbr.rel (0) target = $region9
  $region8: #{_drop_path_apply.1} parent=0 // pred_region
    _
  $region9: #{_drop_path_apply.1} parent=0 // pred_fallthru
    _
  %v11 = vld [vmem:[%s1] sm:$0xff]
  %v12 = vld [vmem:[%s1 + $0x8] sm:$0xff]
  %v13 = vld [vmem:[%s0] sm:$0x3]
  %15 = vset.pattern.permute.xlu0 0
  %16 = vperm.xlu0 %15, %v13
  %v17 = vpop.permute.xlu0 %16
  %v19 = vunpack.c.l.s4 269488144
  %v20 = vunpack.c.0.s8 %v19
  %v21 = vperm.slane %v17, %v20
  %v23 = vmul.f32 %v11, %v21
  %v24 = vmul.f32 %v12, %v21
  %25 = vst [vmem:[%s2] sm:$0xff] %v23
  %26 = vst [vmem:[%s2 + $0x8] sm:$0xff] %v24
  // Predicated region
  $region10: #{_drop_path_apply.1} parent=0 // pred_check
    _
  $region11: #{_drop_path_apply.1} parent=0 // pred_check_branch
    %28 = sbr.rel (0) target = $region13
  $region12: #{_drop_path_apply.1} parent=0 // pred_region
    _
  $region13: #{_drop_path_apply.1} parent=0 // pred_fallthru
    _
  // Predicated region
  $region14: #{_drop_path_apply.1} parent=0 // pred_check
    _
  $region15: #{_drop_path_apply.1} parent=0 // pred_check_branch
    %30 = sbr.rel (0) target = $region17
  $region16: #{_drop_path_apply.1} parent=0 // pred_region
    _
  $region17: #{_drop_path_apply.1} parent=0 // pred_fallthru
    _

</llo_original>
